<compile_context>
chip_gen: v6e
topology: v6e:2x2x1
jax: 0.10.0
libtpu: 0.0.40
codegen_flags: <defaults>
</compile_context>

<pallas_src>
import functools

import jax
import jax.numpy as jnp
from jax.experimental import pallas as pl
from jax.experimental.pallas import tpu as pltpu


LANE = 128
MIB = 1024 * 1024


# ------------------------------ small helpers ------------------------------

def _round_up(x, m):
    return ((x + m - 1) // m) * m


def _pad_to(a, target_shape):
    pads = [(0, t - s) for s, t in zip(a.shape, target_shape)]
    if any(p[1] for p in pads):
        return jnp.pad(a, pads)
    return a


def _vmem_capacity_bytes():
    """Generation-aware physical VMEM; falls back to the v7x (64 MiB) value."""
    try:
        info = pltpu.get_tpu_info()
        cap = getattr(info, "vmem_capacity_bytes", None)
        if cap:
            return int(cap)
    except Exception:
        pass
    return 64 * MIB


def _vmem_cap_limit():
    """Cap for vmem_limit_bytes: ~48 MiB on 64-MiB chips (v7x), ~100 MiB else."""
    cap = _vmem_capacity_bytes()
    return 48 * MIB if cap <= 80 * MIB else 100 * MIB


def _linear_row_tile(n):
    """Row tile (f32 activations): multiple of 8, capped at 512."""
    n8 = _round_up(n, 8)
    if n8 <= 512:
        return n8, n8
    tm = 512
    return tm, _round_up(n, tm)


def _rgcn_tiles(n):
    """(tm, tk, n_pad) for the RGCN message matmul.

    n_pad is 128-aligned (lane-dense adjacency, clean bf16/int8 tiling).
    tk (source-node / contraction block) is the largest of 512/384/256/128
    dividing n_pad.  tm (destination-row block) is a multiple of 32 (int8
    sublane packing), divides n_pad, and is halved if needed so that
    m_tiles >= 2 (keeps both v7x TensorCores busy).
    """
    n_pad = _round_up(max(n, 1), LANE)
    tk = next(c for c in (512, 384, 256, 128) if n_pad % c == 0)
    tm = next(c for c in (512, 256, 128) if n_pad % c == 0)
    if n_pad // tm < 2:
        tm = max(64, n_pad // 2)
    return tm, tk, n_pad


# ----------------------------- Pallas kernels ------------------------------

def _linear_kernel(x_ref, w_ref, b_ref, o_ref):
    o_ref[...] = (
        jnp.dot(x_ref[...].astype(jnp.bfloat16),
                w_ref[...].astype(jnp.bfloat16),
                preferred_element_type=jnp.float32)
        + b_ref[...]
    )


def linear(x, w, b):
    """x: [N, Din], w: [Din, Dout], b: [Dout] -> [N, Dout] (f32)."""
    n, din = x.shape
    dout = w.shape[1]
    din_p = _round_up(din, LANE)
    dout_p = _round_up(dout, LANE)
    tm, n_pad = _linear_row_tile(n)

    x_p = _pad_to(x, (n_pad, din_p))
    w_p = _pad_to(w, (din_p, dout_p))
    b_p = _pad_to(b.reshape(1, -1), (1, dout_p))

    resident = din_p * dout_p * 4 + dout_p * 4
    per_step = 2 * (tm * din_p * 4 + tm * dout_p * 4)
    vmem_limit = min(_vmem_cap_limit(),
                     max(16 * MIB, 2 * (resident + per_step) + MIB))

    out = pl.pallas_call(
        _linear_kernel,
        out_shape=jax.ShapeDtypeStruct((n_pad, dout_p), jnp.float32),
        grid_spec=pltpu.PrefetchScalarGridSpec(
            num_scalar_prefetch=0,
            grid=(n_pad // tm,),
            in_specs=[
                pl.BlockSpec((tm, din_p), lambda i: (i, 0)),
                pl.BlockSpec((din_p, dout_p), lambda i: (0, 0)),   # resident
                pl.BlockSpec((1, dout_p), lambda i: (0, 0)),       # resident
            ],
            out_specs=pl.BlockSpec((tm, dout_p), lambda i: (i, 0)),
        ),
        compiler_params=pltpu.CompilerParams(
            dimension_semantics=("parallel",),
            vmem_limit_bytes=vmem_limit),
        cost_estimate=pl.CostEstimate(
            flops=2 * n_pad * din_p * dout_p,
            transcendentals=0,
            bytes_accessed=n_pad * din_p * 4 + din_p * dout_p * 4
            + n_pad * dout_p * 4),
    )(x_p, w_p, b_p)
    return out[:n, :dout]


def _rel_project_kernel(x_ref, wr_ref, xr_ref):
    # xr[r, tile] = x[tile] @ W_r   (bf16 output for the MXU-bound stage 2)
    xr_ref[...] = jnp.dot(
        x_ref[...].astype(jnp.bfloat16), wr_ref[...].astype(jnp.bfloat16),
        preferred_element_type=jnp.float32,
    ).astype(xr_ref.dtype)


def _rgcn_kernel(x_ref, wself_ref, b_ref, a_ref, xr_ref, invdeg_ref, o_ref,
                 *, apply_relu, xr_resident, tk, k_tiles):
    r = pl.program_id(1)
    k = pl.program_id(2)

    @pl.when((r == 0) & (k == 0))
    def _():
        o_ref[...] = (
            jnp.dot(x_ref[...].astype(jnp.bfloat16),
                    wself_ref[...].astype(jnp.bfloat16),
                    preferred_element_type=jnp.float32)
            + b_ref[...]
        )

    # message passing for relation r, source block k, destination tile m:
    #   o += (1/deg_r) * (counts_r[m, k] @ xr_r[k])     (bf16 x bf16 -> f32)
    a = a_ref[...].astype(jnp.float32).astype(jnp.bfloat16)  # int8 counts
    if xr_resident:
        if k_tiles == 1:
            xr = xr_ref[r]
        else:
            koff = pl.multiple_of(k * tk, tk)
            xr = xr_ref[r, pl.ds(koff, tk), :]
    else:
        xr = xr_ref[...]
    o_ref[...] += invdeg_ref[...] * jnp.dot(a, xr,
                                            preferred_element_type=jnp.float32)

    if apply_relu:
        @pl.when((r == pl.num_programs(1) - 1) & (k == pl.num_programs(2) - 1))
        def _():
            o_ref[...] = jnp.maximum(o_ref[...], 0.0)


def rgcn_layer(x, w_self, w_rel, adj_counts, inv_deg, bias, apply_relu):
    """One WRGCN layer:  out = x @ W_self + b + sum_r (1/deg_r) (C_r @ (x @ W_r)).

    x:           [N, Din]            f32
    w_self:      [Din, Dout]         f32
    w_rel:       [R, Din, Dout]      f32
    adj_counts:  [R, N_pad, N_pad]   int8 edge counts (dst x src), zero-padded
    inv_deg:     [R, N_pad, 1]       f32 per-(relation, dst) inverse degree
    bias:        [Dout]              f32
    """
    n, din = x.shape
    r_num, _, dout = w_rel.shape
    if r_num < 1:
        raise ValueError("num_rel must be >= 1 (grid would be empty)")

    tm, tk, n_pad = _rgcn_tiles(n)
    if adj_counts.shape != (r_num, n_pad, n_pad):
        raise ValueError("adjacency padding does not match rgcn tiling")
    if inv_deg.shape != (r_num, n_pad, 1):
        raise ValueError("inverse-degree padding does not match rgcn tiling")

    din_p = _round_up(din, LANE)
    dout_p = _round_up(dout, LANE)

    x_p = _pad_to(x, (n_pad, din_p))
    w_self_p = _pad_to(w_self, (din_p, dout_p))
    w_rel_p = _pad_to(w_rel, (r_num, din_p, dout_p))
    b_p = _pad_to(bias.reshape(1, -1), (1, dout_p))

    m_tiles = n_pad // tm
    k_tiles = n_pad // tk
    cap_limit = _vmem_cap_limit()

    # ---- stage 1: xr[r] = x @ W_r, once per relation; grid ordered (m, r) so
    # x is fetched once per row tile and only the small W_r blocks refetch.
    stage1_need = 2 * (tm * din_p * 4 + din_p * dout_p * 4 + tm * dout_p * 2)
    xr = pl.pallas_call(
        _rel_project_kernel,
        out_shape=jax.ShapeDtypeStruct((r_num, n_pad, dout_p), jnp.bfloat16),
        grid_spec=pltpu.PrefetchScalarGridSpec(
            num_scalar_prefetch=0,
            grid=(m_tiles, r_num),
            in_specs=[
                pl.BlockSpec((tm, din_p), lambda m, r: (m, 0)),
                pl.BlockSpec((pl.Squeezed(), din_p, dout_p),
                             lambda m, r: (r, 0, 0)),
            ],
            out_specs=pl.BlockSpec((pl.Squeezed(), tm, dout_p),
                                   lambda m, r: (r, m, 0)),
        ),
        compiler_params=pltpu.CompilerParams(
            dimension_semantics=("parallel", "arbitrary"),
            vmem_limit_bytes=min(cap_limit, max(16 * MIB, 2 * stage1_need))),
        cost_estimate=pl.CostEstimate(
            flops=2 * r_num * n_pad * din_p * dout_p,
            transcendentals=0,
            bytes_accessed=n_pad * din_p * 4
            + r_num * m_tiles * din_p * dout_p * 4
            + r_num * n_pad * dout_p * 2),
    )(x_p, w_rel_p)

    # ---- stage 2: grid = (dst tiles [parallel], relations, src K blocks).
    xr_bytes = r_num * n_pad * dout_p * 2
    stream_fixed = (
        2 * (tm * tk * 1 + tm * din_p * 4 + tm * 4)       # A, x, invdeg (x2 buf)
        + din_p * dout_p * 4 + dout_p * 4                 # resident weights
        + 2 * tm * dout_p * 4)                            # output block
    xr_resident = (stream_fixed + xr_bytes) <= int(0.75 * cap_limit)

    if xr_resident:
        xr_spec = pl.BlockSpec((r_num, n_pad, dout_p), lambda m, r, k: (0, 0, 0))
        need = stream_fixed + xr_bytes
        xr_hbm = r_num * n_pad * dout_p * 2
    else:
        xr_spec = pl.BlockSpec((pl.Squeezed(), tk, dout_p),
                               lambda m, r, k: (r, k, 0))
        need = stream_fixed + 2 * tk * dout_p * 2
        xr_hbm = m_tiles * r_num * n_pad * dout_p * 2

    vmem_limit = min(cap_limit, max(32 * MIB, 2 * need + 2 * MIB))

    flops = 2 * n_pad * din_p * dout_p + r_num * 2 * n_pad * n_pad * dout_p
    bytes_accessed = (
        r_num * n_pad * n_pad * 1            # adjacency counts (int8)
        + xr_hbm                             # xr stream
        + n_pad * din_p * 4                  # x
        + din_p * dout_p * 4                 # w_self
        + r_num * n_pad * 4                  # inverse degree
        + n_pad * dout_p * 4)                # output

    kernel = functools.partial(_rgcn_kernel, apply_relu=apply_relu,
                               xr_resident=xr_resident, tk=tk, k_tiles=k_tiles)

    out = pl.pallas_call(
        kernel,
        out_shape=jax.ShapeDtypeStruct((n_pad, dout_p), jnp.float32),
        grid_spec=pltpu.PrefetchScalarGridSpec(
            num_scalar_prefetch=0,
            grid=(m_tiles, r_num, k_tiles),
            in_specs=[
                pl.BlockSpec((tm, din_p), lambda m, r, k: (m, 0)),
                pl.BlockSpec((din_p, dout_p), lambda m, r, k: (0, 0)),  # resident
                pl.BlockSpec((1, dout_p), lambda m, r, k: (0, 0)),      # resident
                pl.BlockSpec((pl.Squeezed(), tm, tk),
                             lambda m, r, k: (r, m, k)),                # counts
                xr_spec,                                                # xr
                pl.BlockSpec((pl.Squeezed(), tm, 1),
                             lambda m, r, k: (r, m, 0)),                # 1/deg
            ],
            out_specs=pl.BlockSpec((tm, dout_p), lambda m, r, k: (m, 0)),
        ),
        compiler_params=pltpu.CompilerParams(
            dimension_semantics=("parallel", "arbitrary", "arbitrary"),
            vmem_limit_bytes=vmem_limit),
        cost_estimate=pl.CostEstimate(
            flops=flops, transcendentals=0, bytes_accessed=bytes_accessed),
    )(x_p, w_self_p, b_p, adj_counts, xr, inv_deg)
    return out[:n, :dout]


def _distmult_kernel(s_ref, r_ref, o_ref, out_ref):
    # inputs are (D, TE): reduce over sublanes, write a lane-dense (1, TE) row.
    out_ref[...] = jnp.sum(s_ref[...] * r_ref[...] * o_ref[...],
                           axis=0, keepdims=True)


def distmult_score(s_emb, rel_emb, o_emb):
    """All inputs [E, D] -> scores [E].  Laid out as (D_pad, E_pad) so the
    output blocks are lane-dense (width a multiple of 128)."""
    e, d = s_emb.shape
    d_pad = _round_up(d, 8)
    e128 = _round_up(e, LANE)
    te = 128
    for cand in (2048, 1024, 512, 256, 128):
        if cand <= max(e128, 128) and 3 * d_pad * cand * 4 * 2 <= 6 * MIB:
            te = cand
            break
    e_pad = _round_up(e, te)

    s_t = _pad_to(s_emb.T, (d_pad, e_pad))
    r_t = _pad_to(rel_emb.T, (d_pad, e_pad))
    o_t = _pad_to(o_emb.T, (d_pad, e_pad))

    out = pl.pallas_call(
        _distmult_kernel,
        out_shape=jax.ShapeDtypeStruct((1, e_pad), jnp.float32),
        grid_spec=pltpu.PrefetchScalarGridSpec(
            num_scalar_prefetch=0,
            grid=(e_pad // te,),
            in_specs=[
                pl.BlockSpec((d_pad, te), lambda i: (0, i)),
                pl.BlockSpec((d_pad, te), lambda i: (0, i)),
                pl.BlockSpec((d_pad, te), lambda i: (0, i)),
            ],
            out_specs=pl.BlockSpec((1, te), lambda i: (0, i)),
        ),
        compiler_params=pltpu.CompilerParams(
            dimension_semantics=("parallel",)),
    )(s_t, r_t, o_t)
    return out[0, :e]


# ------------------------------ JAX glue -----------------------------------

def build_adjacency(edge_index, edge_type, num_rel, num_nodes, n_pad):
    """Dense per-relation edge counts (int8, dst x src) plus a separate f32
    inverse-degree row scale, both zero-padded to the kernel tiling."""
    src, dst = edge_index[0], edge_index[1]
    counts = jnp.zeros((num_rel, num_nodes, num_nodes), dtype=jnp.float32)
    counts = counts.at[edge_type, dst, src].add(1.0)
    deg = jnp.sum(counts, axis=-1, keepdims=True)
    inv_deg = 1.0 / jnp.maximum(deg, 1.0)
    counts_p = _pad_to(counts, (num_rel, n_pad, n_pad)).astype(jnp.int8)
    inv_deg_p = _pad_to(inv_deg, (num_rel, n_pad, 1)).astype(jnp.float32)
    return counts_p, inv_deg_p


class LinkPredictorPallas:
    """WRGCN encoder + DistMult decoder, forward pass only."""

    def __init__(self, key, modality_cfg, num_rel, proj_dim, h_dim,
                 num_hidden_layers, output_dim, num_nodes):
        self.num_rel = num_rel
        self.num_nodes = num_nodes

        def init(k, shape, scale=0.1):
            return scale * jax.random.normal(k, shape, dtype=jnp.float32)

        keys = iter(jax.random.split(key, 64))

        # per-modality linear projections  (Node modules)
        self.node_projections = {}
        for name, emb_size in modality_cfg.items():
            self.node_projections[name] = {
                "w": init(next(keys), (emb_size, proj_dim)),
                "b": init(next(keys), (proj_dim,)),
            }

        # RGCN stack: proj_dim -> h_dim, (h_dim -> h_dim) * hidden, h_dim -> output_dim
        dims = [proj_dim, h_dim] + [h_dim] * num_hidden_layers + [output_dim]
        self.graph_conv = []
        for din, dout in zip(dims[:-1], dims[1:]):
            self.graph_conv.append({
                "w_self": init(next(keys), (din, dout)),
                "w_rel": init(next(keys), (num_rel, din, dout)),
                "b": init(next(keys), (dout,)),
            })

        # DistMult relation diagonal weights
        self.rel_weight = init(next(keys), (num_rel, output_dim))

    def projection(self, nodes):
        projected, indices = [], []
        for node_type, node_data in nodes.items():
            p = self.node_projections[node_type]
            x = linear(node_data["embeddings"], p["w"], p["b"])
            projected.append(x)
            indices.append(node_data["node_indices"])
        indices = jnp.concatenate(indices)
        projected = jnp.concatenate(projected, axis=0)
        order = jnp.argsort(indices)          # sort by global node index
        return projected[order]

    def encoder(self, nodes, triples):
        edge_index = triples[jnp.array([0, 2]), :]   # (subject, object)
        edge_type = triples[1, :]
        _, _, n_pad = _rgcn_tiles(self.num_nodes)
        adj_counts, inv_deg = build_adjacency(edge_index, edge_type,
                                              self.num_rel, self.num_nodes,
                                              n_pad)
        u = self.projection(nodes)
        for layer in self.graph_conv[:-1]:
            u = rgcn_layer(u, layer["w_self"], layer["w_rel"], adj_counts,
                           inv_deg, layer["b"], apply_relu=True)
        last = self.graph_conv[-1]
        u = rgcn_layer(u, last["w_self"], last["w_rel"], adj_counts,
                       inv_deg, last["b"], apply_relu=False)
        return u

    def decoder(self, out_emb, triples):
        s_emb = out_emb[triples[0]]
        o_emb = out_emb[triples[2]]
        r_emb = self.rel_weight[triples[1]]
        return distmult_score(s_emb, r_emb, o_emb)

    def forward(self, nodes, triples, neg_triples=None):
        output = self.encoder(nodes, triples)
        if neg_triples is not None:
            triples = jnp.concatenate((triples, neg_triples), axis=-1)
        scores = self.decoder(output, triples)
        return output, scores


# ------------------------------- main ---------------------------------------

if __name__ == "__main__":
    key = jax.random.PRNGKey(0)
    k_model, k_gene, k_drug, k_perm, k_tri, k_neg = jax.random.split(key, 6)

    # graph / gnn config (small, deterministic)
    num_nodes = 16
    num_rel = 3
    proj_dim = 32
    h_dim = 32
    num_hidden_layers = 1
    output_dim = 32
    modality_cfg = {"gene": 48, "drug": 24}   # modality -> raw embedding size

    model = LinkPredictorPallas(k_model, modality_cfg, num_rel, proj_dim,
                                h_dim, num_hidden_layers, output_dim, num_nodes)

    # nodes: two modalities, 8 nodes each, global indices are a permutation of 0..15
    perm = jax.random.permutation(k_perm, num_nodes).astype(jnp.int32)
    nodes = {
        "gene": {
            "embeddings": jax.random.normal(k_gene, (8, 48), dtype=jnp.float32),
            "node_indices": perm[:8],
        },
        "drug": {
            "embeddings": jax.random.normal(k_drug, (8, 24), dtype=jnp.float32),
            "node_indices": perm[8:],
        },
    }

    # triples [3, E]: rows (subject, relation, object)
    E, E_neg = 24, 8
    tri_keys = jax.random.split(k_tri, 3)
    triples = jnp.stack([
        jax.random.randint(tri_keys[0], (E,), 0, num_nodes),
        jax.random.randint(tri_keys[1], (E,), 0, num_rel),
        jax.random.randint(tri_keys[2], (E,), 0, num_nodes),
    ]).astype(jnp.int32)
    neg_keys = jax.random.split(k_neg, 3)
    neg_triples = jnp.stack([
        jax.random.randint(neg_keys[0], (E_neg,), 0, num_nodes),
        jax.random.randint(neg_keys[1], (E_neg,), 0, num_rel),
        jax.random.randint(neg_keys[2], (E_neg,), 0, num_nodes),
    ]).astype(jnp.int32)

    out_emb, scores = model.forward(nodes, triples, neg_triples)
    jax.block_until_ready((out_emb, scores))
    assert out_emb.shape == (num_nodes, output_dim)
    assert scores.shape == (E + E_neg,)
    print("KERNEL_OK")
</pallas_src>

<mosaic_0001>
module attributes {stable_mosaic.version = 11 : i64} {
  func.func @_linear_kernel(%arg0: i32, %arg1: memref<8x128xf32, #tpu.memory_space<vmem>>, %arg2: memref<128x128xf32, #tpu.memory_space<vmem>>, %arg3: memref<1x128xf32, #tpu.memory_space<vmem>>, %arg4: memref<8x128xf32, #tpu.memory_space<vmem>>) attributes {dimension_semantics = [#tpu.dimension_semantics<parallel>], iteration_bounds = array<i64: 1>, scalar_prefetch = 0 : i64, scratch_operands = 0 : i64, tpu.core_type = #tpu.core_type<tc>, window_params = [{transform_indices = @transform_0, window_bounds = array<i64: 8, 128>}, {pipeline_mode = #tpu.pipeline_mode<synchronous>, transform_indices = @transform_1, window_bounds = array<i64: 128, 128>}, {pipeline_mode = #tpu.pipeline_mode<synchronous>, transform_indices = @transform_2, window_bounds = array<i64: 1, 128>}, {transform_indices = @transform_3, window_bounds = array<i64: 8, 128>}]} {
    %c0 = arith.constant 0 : index
    %c0_0 = arith.constant 0 : index
    %0 = vector.load %arg1[%c0, %c0_0] : memref<8x128xf32, #tpu.memory_space<vmem>>, vector<8x128xf32>
    %1 = arith.truncf %0 : vector<8x128xf32> to vector<8x128xbf16>
    %c0_1 = arith.constant 0 : index
    %c0_2 = arith.constant 0 : index
    %2 = vector.load %arg2[%c0_1, %c0_2] : memref<128x128xf32, #tpu.memory_space<vmem>>, vector<128x128xf32>
    %3 = arith.truncf %2 : vector<128x128xf32> to vector<128x128xbf16>
    %cst = arith.constant dense<0.000000e+00> : vector<8x128xf32>
    %4 = tpu.matmul %1, %3, %cst {dimension_numbers = #tpu.dot_dimension_numbers<[1], [0], [0], [1], [0, 0, 1, 1], [], []>} : vector<8x128xbf16>, vector<128x128xbf16>, vector<8x128xf32> -> vector<8x128xf32>
    %c0_3 = arith.constant 0 : index
    %c0_4 = arith.constant 0 : index
    %5 = vector.load %arg3[%c0_3, %c0_4] : memref<1x128xf32, #tpu.memory_space<vmem>>, vector<1x128xf32>
    %6 = vector.broadcast %5 : vector<1x128xf32> to vector<8x128xf32>
    %7 = arith.addf %4, %6 : vector<8x128xf32>
    %c0_5 = arith.constant 0 : index
    %c0_6 = arith.constant 0 : index
    %8 = vector.load %arg4[%c0_5, %c0_6] : memref<8x128xf32, #tpu.memory_space<vmem>>, vector<8x128xf32>
    tpu.vector_store %arg4[%c0_5, %c0_6], %7 {strides = array<i32>} : memref<8x128xf32, #tpu.memory_space<vmem>>, vector<8x128xf32>,
    return
  }
  func.func @transform_0(%arg0: i32) -> (i32, i32) {
    %c0_i32 = arith.constant 0 : i32
    %c0_i32_0 = arith.constant 0 : i32
    return %arg0, %c0_i32 : i32, i32
  }
  func.func @transform_1(%arg0: i32) -> (i32, i32) {
    %c0_i32 = arith.constant 0 : i32
    %c0_i32_0 = arith.constant 0 : i32
    %c0_i32_1 = arith.constant 0 : i32
    return %c0_i32, %c0_i32_0 : i32, i32
  }
  func.func @transform_2(%arg0: i32) -> (i32, i32) {
    %c0_i32 = arith.constant 0 : i32
    %c0_i32_0 = arith.constant 0 : i32
    %c0_i32_1 = arith.constant 0 : i32
    return %c0_i32, %c0_i32_0 : i32, i32
  }
  func.func @transform_3(%arg0: i32) -> (i32, i32) {
    %c0_i32 = arith.constant 0 : i32
    %c0_i32_0 = arith.constant 0 : i32
    return %arg0, %c0_i32 : i32, i32
  }
}

</mosaic_0001>

<llo_original>
// kernel: tpu_custom_call.1
$region0: #{tpu_custom_call.1}
  #allocation0 [shape = 'u32[]', space=smem, size = 0x4, offset = 0x4, fixed_abs, tag = 'smem constant byte address 0x4 - core index']
  #allocation1 [shape = 'u32[144,128]{1,0:T(1,128)}', space=vmem, size = 0x12000, scoped, tag = 'internal scratch']
  %s0 = inlined_call_operand.hbm [shape: f32[8,128], index: 0, kind: input, shape index: {}]
  %s1 = inlined_call_operand.hbm [shape: f32[128,128], index: 1, kind: input, shape index: {}]
  %s2 = inlined_call_operand.vmem [shape: f32[1,128], index: 2, kind: input, shape index: {}]
  %s3 = inlined_call_operand.hbm [shape: f32[8,128], index: 3, kind: output, shape index: {}]
  %s4 = sld [smem:[#allocation0]]
  $region30: #{tpu_custom_call.1} parent=0
    _
  %s6 = ssub.s32 1, %s4
  %s7 = scalar_select 0, %s6, %s4
  $region1: #{tpu_custom_call.1} parent=0
    #allocation2 [shape = 'u8[4096]{0}', space=vmem, size = 0x1000, scoped, tag = 'input window, operand 0, single buffered']
    #allocation3 [shape = 's32[1]{0}', space=sflag, size = 0x4, scoped, tag = 'scoped memory for tpu_custom_call.1']
    #allocation4 [shape = 's32[1]{0}', space=sflag, size = 0x4, scoped, tag = 'scoped memory for tpu_custom_call.1']
    #allocation5 [shape = 'u8[65536]{0}', space=vmem, size = 0x10000, scoped, tag = 'input window, operand 1, single buffered']
    #allocation6 [shape = 's32[1]{0}', space=sflag, size = 0x4, scoped, tag = 'scoped memory for tpu_custom_call.1']
    #allocation7 [shape = 'u8[4096]{0}', space=vmem, size = 0x1000, scoped, tag = 'output window, operand 0, single buffered']
    %8 = vsyncpa [#allocation3], 0
    %9 = vsyncpa [#allocation6], 0
    %10 = vsyncpa [#allocation4], 0
    // Predicated region
    $region2: #{tpu_custom_call.1} parent=1 // pred_check
      _
    $region3: #{tpu_custom_call.1} parent=1 // pred_check_branch
      %12 = sbr.rel (0) target = $region5
    $region4: #{tpu_custom_call.1} parent=1 // pred_region
      %s14 = ssub.s32 128, 128
      %15 = vsyncadd [#allocation3], %s14
      %s17 = sshll.u32 [#allocation2], 4
      %s18 = int_to_ptr.vmem [resolvable:$true] %s17
      %20 = dma.hbm_to_vmem [thread:$0]  %s0, 128, %s18, [#allocation3]
    $region5: #{tpu_custom_call.1} parent=1 // pred_fallthru
      _
    // Predicated region
    $region6: #{tpu_custom_call.1} parent=1 // pred_check
      _
    $region7: #{tpu_custom_call.1} parent=1 // pred_check_branch
      %22 = sbr.rel (0) target = $region9
    $region8: #{tpu_custom_call.1} parent=1 // pred_region
      %s24 = ssub.s32 2048, 2048
      %25 = vsyncadd [#allocation6], %s24
      %s26 = sshll.u32 [#allocation5], 4
      %s27 = int_to_ptr.vmem [resolvable:$true] %s26
      %32 = dma.hbm_to_vmem [thread:$0]  %s1, 2048, %s27, [#allocation6], 128, 128, 8
    $region9: #{tpu_custom_call.1} parent=1 // pred_fallthru
      _
    // Predicated region
    $region10: #{tpu_custom_call.1} parent=1 // pred_check
      _
    $region11: #{tpu_custom_call.1} parent=1 // pred_check_branch
      %34 = sbr.rel (0) target = $region13
    $region12: #{tpu_custom_call.1} parent=1 // pred_region
      _
    $region13: #{tpu_custom_call.1} parent=1 // pred_fallthru
      _
    // Predicated region
    $region14: #{tpu_custom_call.1} parent=1 // pred_check
      _
    $region15: #{tpu_custom_call.1} parent=1 // pred_check_branch
      %36 = sbr.rel (0) target = $region17
    $region16: #{tpu_custom_call.1} parent=1 // pred_region
      %37 = dma.done [#allocation3], 128
    $region17: #{tpu_custom_call.1} parent=1 // pred_fallthru
      _
    // Predicated region
    $region18: #{tpu_custom_call.1} parent=1 // pred_check
      _
    $region19: #{tpu_custom_call.1} parent=1 // pred_check_branch
      %39 = sbr.rel (0) target = $region21
    $region20: #{tpu_custom_call.1} parent=1 // pred_region
      %40 = dma.done [#allocation6], 2048
    $region21: #{tpu_custom_call.1} parent=1 // pred_fallthru
      _
    %v42 = vld [vmem:[#allocation2] sm:$0xff]
    %v43 = vpack.c.bf16 %v42, %v42
    %v44 = vld [vmem:[#allocation5] sm:$0xff]
    %v45 = vld [vmem:[#allocation5 + $0x8] sm:$0xff]
    %v46 = vld [vmem:[#allocation5 + $0x10] sm:$0xff]
    %v47 = vld [vmem:[#allocation5 + $0x18] sm:$0xff]
    %v48 = vld [vmem:[#allocation5 + $0x20] sm:$0xff]
    %v49 = vld [vmem:[#allocation5 + $0x28] sm:$0xff]
    %v50 = vld [vmem:[#allocation5 + $0x30] sm:$0xff]
    %v51 = vld [vmem:[#allocation5 + $0x38] sm:$0xff]
    %v52 = vld [vmem:[#allocation5 + $0x40] sm:$0xff]
    %v53 = vld [vmem:[#allocation5 + $0x48] sm:$0xff]
    %v54 = vld [vmem:[#allocation5 + $0x50] sm:$0xff]
    %v55 = vld [vmem:[#allocation5 + $0x58] sm:$0xff]
    %v56 = vld [vmem:[#allocation5 + $0x60] sm:$0xff]
    %v57 = vld [vmem:[#allocation5 + $0x68] sm:$0xff]
    %v58 = vld [vmem:[#allocation5 + $0x70] sm:$0xff]
    %v59 = vld [vmem:[#allocation5 + $0x78] sm:$0xff]
    %v60 = vpack.c.bf16 %v45, %v44
    %v61 = vpack.c.bf16 %v47, %v46
    %v62 = vpack.c.bf16 %v49, %v48
    %v63 = vpack.c.bf16 %v51, %v50
    %v64 = vpack.c.bf16 %v53, %v52
    %v65 = vpack.c.bf16 %v55, %v54
    %v66 = vpack.c.bf16 %v57, %v56
    %v67 = vpack.c.bf16 %v59, %v58
    %v68 = vld [vmem:[%s2] sm:$0x1]
    %v70 = vlaneseq
    %v71 = vshrl.u32 %v70, 7
    %v72 = vsub.s32 0, %v71
    %v73 = vrot.slane %v68, %v72
    %75 = vmatprep.subr.bf16.mxu0 0
    %76 = vmatpush1.bf16.msra.mxu0 %v67
    %77 = vmatprep.subr.bf16.mxu0 0
    %78 = vmatpush1.bf16.msra.mxu0 %v66
    %79 = vmatprep.subr.bf16.mxu0 0
    %80 = vmatpush1.bf16.msra.mxu0 %v65
    %81 = vmatprep.subr.bf16.mxu0 0
    %82 = vmatpush1.bf16.msra.mxu0 %v64
    %83 = vmatprep.subr.bf16.mxu0 0
    %84 = vmatpush1.bf16.msra.mxu0 %v63
    %85 = vmatprep.subr.bf16.mxu0 0
    %86 = vmatpush1.bf16.msra.mxu0 %v62
    %87 = vmatprep.subr.bf16.mxu0 0
    %88 = vmatpush1.bf16.msra.mxu0 %v61
    %89 = vmatprep.subr.bf16.mxu0 0
    %90 = vmatpush1.bf16.msra.mxu0 %v60
    %91 = vmatprep.subr.bf16.mxu0 0
    %92 = vmatpush2.bf16.msra.mxu0 0
    %93 = vmatprep.subr.bf16.mxu0 0
    %94 = vmatpush2.bf16.msra.mxu0 0
    %95 = vmatprep.subr.bf16.mxu0 0
    %96 = vmatpush2.bf16.msra.mxu0 0
    %97 = vmatprep.subr.bf16.mxu0 0
    %98 = vmatpush2.bf16.msra.mxu0 0
    %99 = vmatprep.subr.bf16.mxu0 0
    %100 = vmatpush2.bf16.msra.mxu0 0
    %101 = vmatprep.subr.bf16.mxu0 0
    %102 = vmatpush2.bf16.msra.mxu0 0
    %103 = vmatprep.subr.bf16.mxu0 0
    %104 = vmatpush2.bf16.msra.mxu0 0
    %105 = vmatprep.subr.bf16.mxu0 0
    %106 = vmatpush2.bf16.msra.mxu0 0
    %107 = vmatprep.mubr.bf16.mxu0 0
    %108 = vmatmul.mubr.bf16.gmra.mxu0 %v43
    %v109 = vpop.f32.mrf.mxu0
    %v110 = vadd.f32 %v73, %v109
    %v111 = vpop.f32.mrf.mxu0
    %v112 = vpop.f32.mrf.mxu0
    %v113 = vpop.f32.mrf.mxu0
    %114 = vdwg.mxu0
    %115 = vst [vmem:[#allocation7] sm:$0xff] %v110
    // Predicated region
    $region22: #{tpu_custom_call.1} parent=1 // pred_check
      _
    $region23: #{tpu_custom_call.1} parent=1 // pred_check_branch
      %117 = sbr.rel (0) target = $region25
    $region24: #{tpu_custom_call.1} parent=1 // pred_region
      %s119 = ssub.s32 128, 128
      %120 = vsyncadd [#allocation4], %s119
      %s122 = sshll.u32 [#allocation7], 4
      %s123 = int_to_ptr.vmem [resolvable:$true] %s122
      %125 = dma.vmem_to_hbm [thread:$0]  %s123, 128, %s3, [#allocation4]
    $region25: #{tpu_custom_call.1} parent=1 // pred_fallthru
      _
    // Predicated region
    $region26: #{tpu_custom_call.1} parent=1 // pred_check
      _
    $region27: #{tpu_custom_call.1} parent=1 // pred_check_branch
      %127 = sbr.rel (0) target = $region29
    $region28: #{tpu_custom_call.1} parent=1 // pred_region
      %128 = dma.done [#allocation4], 128
    $region29: #{tpu_custom_call.1} parent=1 // pred_fallthru
      _
    %129 = vsyncpa [#allocation3], 1
    %130 = vsyncpa [#allocation6], 1
    %131 = vsyncpa [#allocation4], 1

</llo_original>
